<compile_context>
chip_gen: v7x
topology: tpu7x:2x2x1
jax: 0.10.0
libtpu: 0.0.40
codegen_flags: <defaults>
</compile_context>

<pallas_src>
import jax
import jax.numpy as jnp
import numpy as np
from jax import lax
from jax.experimental import pallas as pl
from jax.experimental.pallas import tpu as pltpu

LANE = 128
BLOCK_ROWS = 4096  # rows per grid step: 2 MiB/input (f32) -> 12 MiB double-buffered total


def _round_up(x, m):
    return ((x + m - 1) // m) * m


def _num_tensorcores():
    """2 TensorCores per chip on v7x, 1 on v5e/v6e."""
    try:
        kind = jax.devices()[0].device_kind.lower()
    except Exception:
        return 1
    return 2 if ("v7" in kind or "7x" in kind) else 1


def triplet_loss(anchor, positive, negative, margin=100.0, block_rows=BLOCK_ROWS):
    assert anchor.shape == positive.shape == negative.shape
    assert anchor.dtype == positive.dtype == negative.dtype
    total = int(anchor.size)
    itemsize = int(np.dtype(anchor.dtype).itemsize)
    sub = {4: 8, 2: 16, 1: 32}.get(itemsize, 8)  # sublane packing of the native dtype

    # Lane-dense view.  When numel % 128 == 0 (typical) the reshape is free (no HBM copy);
    # only a ragged < 128-element tail (or a tiny < one-sublane-group input) is zero-padded,
    # and zeros contribute exactly 0 to the fused (a-p)^2 - (a-n)^2 sum.
    pad_elems = (-total) % LANE
    rows = (total + pad_elems) // LANE
    if rows < sub:                      # tiny input: make it one full sublane group
        pad_elems += (sub - rows) * LANE
        rows = sub
    padded_total = total + pad_elems

    def _prep(x):
        x = x.reshape(-1)
        if pad_elems:
            x = jnp.pad(x, (0, pad_elems))
        return x.reshape(rows, LANE)    # native dtype; cast to f32 happens in-kernel

    a2, p2, n2 = _prep(anchor), _prep(positive), _prep(negative)

    # Tile / core-split selection.  tm is a multiple of the sublane packing and never larger
    # than the array, so only the trailing block can be partial (handled by the row mask).
    tm = max(sub, min(_round_up(block_rows, sub), (rows // sub) * sub))
    n_blocks = -(-rows // tm)
    ncores = _num_tensorcores()
    if n_blocks < 2:
        ncores = 1
    per_core = -(-n_blocks // ncores)
    divisible = (rows % tm == 0) and (n_blocks % ncores == 0)

    def in_idx(c, i):
        blk = c * per_core + i
        if not divisible:
            blk = jnp.minimum(blk, n_blocks - 1)   # keep the DMA window in-bounds
        return (blk, 0)

    def kernel(a_ref, p_ref, n_ref, out_ref):
        c = pl.program_id(0)
        i = pl.program_id(1)

        @pl.when(i == 0)
        def _():
            out_ref[...] = jnp.zeros_like(out_ref)

        a = a_ref[...].astype(jnp.float32)
        dp = a - p_ref[...].astype(jnp.float32)
        dn = a - n_ref[...].astype(jnp.float32)
        d = dp * dp - dn * dn           # fused signed term: single accumulator, no big f32 sums

        if not divisible:
            # Rows past the logical end (partial last block, or a clamped duplicate block on
            # the last core) contribute nothing; garbage in the un-DMA'd tail is discarded.
            valid = rows - (c * per_core + i) * tm
            row_ids = lax.broadcasted_iota(jnp.int32, (tm, LANE), 0)
            d = jnp.where(row_ids < valid, d, jnp.float32(0.0))

        # Keep 8 sublane partials per lane (pure vreg adds, no per-step XLU collapse);
        # the final sublane/lane reduction happens once in the wrapper epilogue.
        out_ref[...] += d.reshape(tm // 8, 8, LANE).sum(axis=0)

    tile_spec = pl.BlockSpec((tm, LANE), in_idx)
    out_spec = pl.BlockSpec((8, LANE), lambda c, i: (c, 0))   # resident across the i axis

    partials = pl.pallas_call(
        kernel,
        out_shape=jax.ShapeDtypeStruct((ncores * 8, LANE), jnp.float32),
        grid_spec=pltpu.PrefetchScalarGridSpec(
            num_scalar_prefetch=0,
            grid=(ncores, per_core),
            in_specs=[tile_spec, tile_spec, tile_spec],
            out_specs=out_spec,
        ),
        compiler_params=pltpu.CompilerParams(
            dimension_semantics=("parallel", "arbitrary"),
        ),
        cost_estimate=pl.CostEstimate(
            flops=7 * padded_total,
            transcendentals=0,
            bytes_accessed=3 * padded_total * itemsize + ncores * 8 * LANE * 4,
        ),
    )(a2, p2, n2)

    # Tiny epilogue: reduce per-core lane/sublane partials, add margin, hinge.  (.mean() of a
    # scalar is the scalar itself, matching the PyTorch module.)  Margin stays outside the
    # kernel so changing it never recompiles.
    diff = jnp.sum(partials)            # = sum((a-p)^2) - sum((a-n)^2)
    return jnp.maximum(diff + jnp.float32(margin), jnp.float32(0.0))


if __name__ == "__main__":
    key = jax.random.PRNGKey(0)
    ka, kp, kn = jax.random.split(key, 3)
    shape = (2, 4, 16, 16)  # batch=2, channels=4, spatial=16x16 -> 2048 elems
    anchor = jax.random.normal(ka, shape, dtype=jnp.float32)
    positive = jax.random.normal(kp, shape, dtype=jnp.float32)
    negative = jax.random.normal(kn, shape, dtype=jnp.float32)

    loss = jax.block_until_ready(triplet_loss(anchor, positive, negative, margin=100.0))

    # Reference in float64 (exact w.r.t. f32 inputs) mirroring the PyTorch module; tolerance
    # sized for f32 accumulation of ~2k signed terms.
    a64 = np.asarray(anchor, dtype=np.float64)
    p64 = np.asarray(positive, dtype=np.float64)
    n64 = np.asarray(negative, dtype=np.float64)
    ref = max(np.sum((a64 - p64) ** 2) - np.sum((a64 - n64) ** 2) + 100.0, 0.0)
    assert abs(float(loss) - ref) <= 1e-2 + 2e-4 * abs(ref), (float(loss), ref)

    print("KERNEL_OK")
</pallas_src>

<mosaic_0001>
module attributes {stable_mosaic.version = 11 : i64} {
  func.func @kernel(%arg0: i32, %arg1: i32, %arg2: memref<16x128xf32, #tpu.memory_space<vmem>>, %arg3: memref<16x128xf32, #tpu.memory_space<vmem>>, %arg4: memref<16x128xf32, #tpu.memory_space<vmem>>, %arg5: memref<8x128xf32, #tpu.memory_space<vmem>>) attributes {dimension_semantics = [#tpu.dimension_semantics<parallel>, #tpu.dimension_semantics<arbitrary>], iteration_bounds = array<i64: 1, 1>, scalar_prefetch = 0 : i64, scratch_operands = 0 : i64, tpu.core_type = #tpu.core_type<tc>, window_params = [{transform_indices = @transform_0, window_bounds = array<i64: 16, 128>}, {transform_indices = @transform_1, window_bounds = array<i64: 16, 128>}, {transform_indices = @transform_2, window_bounds = array<i64: 16, 128>}, {transform_indices = @transform_3, window_bounds = array<i64: 8, 128>}]} {
    %c0_i32 = arith.constant 0 : i32
    %0 = arith.cmpi eq, %arg1, %c0_i32 : i32
    %1 = arith.extui %0 : i1 to i32
    %c0_i32_0 = arith.constant 0 : i32
    %2 = arith.cmpi ne, %1, %c0_i32_0 : i32
    scf.if %2 {
      %cst_10 = arith.constant 0.000000e+00 : f32
      %16 = vector.broadcast %cst_10 : f32 to vector<8x128xf32>
      %c0_11 = arith.constant 0 : index
      %c0_12 = arith.constant 0 : index
      %17 = vector.load %arg5[%c0_11, %c0_12] : memref<8x128xf32, #tpu.memory_space<vmem>>, vector<8x128xf32>
      tpu.vector_store %arg5[%c0_11, %c0_12], %16 {strides = array<i32>} : memref<8x128xf32, #tpu.memory_space<vmem>>, vector<8x128xf32>,
    } else {
    }
    %c0 = arith.constant 0 : index
    %c0_1 = arith.constant 0 : index
    %3 = vector.load %arg2[%c0, %c0_1] : memref<16x128xf32, #tpu.memory_space<vmem>>, vector<16x128xf32>
    %c0_2 = arith.constant 0 : index
    %c0_3 = arith.constant 0 : index
    %4 = vector.load %arg3[%c0_2, %c0_3] : memref<16x128xf32, #tpu.memory_space<vmem>>, vector<16x128xf32>
    %5 = arith.subf %3, %4 : vector<16x128xf32>
    %c0_4 = arith.constant 0 : index
    %c0_5 = arith.constant 0 : index
    %6 = vector.load %arg4[%c0_4, %c0_5] : memref<16x128xf32, #tpu.memory_space<vmem>>, vector<16x128xf32>
    %7 = arith.subf %3, %6 : vector<16x128xf32>
    %8 = arith.mulf %5, %5 : vector<16x128xf32>
    %9 = arith.mulf %7, %7 : vector<16x128xf32>
    %10 = arith.subf %8, %9 : vector<16x128xf32>
    %c0_6 = arith.constant 0 : index
    %c0_7 = arith.constant 0 : index
    %11 = vector.load %arg5[%c0_6, %c0_7] : memref<8x128xf32, #tpu.memory_space<vmem>>, vector<8x128xf32>
    %12 = vector.shape_cast %10 : vector<16x128xf32> to vector<2x8x128xf32>
    %cst = arith.constant dense<0.000000e+00> : vector<8x128xf32>
    %13 = vector.multi_reduction <add>, %12, %cst [0] : vector<2x8x128xf32> to vector<8x128xf32>
    %14 = arith.addf %11, %13 : vector<8x128xf32>
    %c0_8 = arith.constant 0 : index
    %c0_9 = arith.constant 0 : index
    %15 = vector.load %arg5[%c0_8, %c0_9] : memref<8x128xf32, #tpu.memory_space<vmem>>, vector<8x128xf32>
    tpu.vector_store %arg5[%c0_8, %c0_9], %14 {strides = array<i32>} : memref<8x128xf32, #tpu.memory_space<vmem>>, vector<8x128xf32>,
    return
  }
  func.func @transform_0(%arg0: i32, %arg1: i32) -> (i32, i32) {
    %c1_i32 = arith.constant 1 : i32
    %0 = arith.muli %arg0, %c1_i32 : i32
    %1 = arith.addi %0, %arg1 : i32
    %c0_i32 = arith.constant 0 : i32
    %c0_i32_0 = arith.constant 0 : i32
    return %1, %c0_i32 : i32, i32
  }
  func.func @transform_1(%arg0: i32, %arg1: i32) -> (i32, i32) {
    %c1_i32 = arith.constant 1 : i32
    %0 = arith.muli %arg0, %c1_i32 : i32
    %1 = arith.addi %0, %arg1 : i32
    %c0_i32 = arith.constant 0 : i32
    %c0_i32_0 = arith.constant 0 : i32
    return %1, %c0_i32 : i32, i32
  }
  func.func @transform_2(%arg0: i32, %arg1: i32) -> (i32, i32) {
    %c1_i32 = arith.constant 1 : i32
    %0 = arith.muli %arg0, %c1_i32 : i32
    %1 = arith.addi %0, %arg1 : i32
    %c0_i32 = arith.constant 0 : i32
    %c0_i32_0 = arith.constant 0 : i32
    return %1, %c0_i32 : i32, i32
  }
  func.func @transform_3(%arg0: i32, %arg1: i32) -> (i32, i32) {
    %c0_i32 = arith.constant 0 : i32
    %c0_i32_0 = arith.constant 0 : i32
    return %arg0, %c0_i32 : i32, i32
  }
}

</mosaic_0001>

<llo_original>
// kernel: tpu_custom_call.1
$region0: #{tpu_custom_call.1}
  #allocation0 [shape = 'u32[]', space=smem, size = 0x4, offset = 0x4, fixed_abs, tag = 'smem constant byte address 0x4 - core index']
  #allocation1 [shape = 'u32[144,128]{1,0:T(1,128)}', space=vmem, size = 0x12000, scoped, tag = 'internal scratch']
  %s0 = inlined_call_operand.hbm [shape: f32[16,128], index: 0, kind: input, shape index: {}]
  %s1 = inlined_call_operand.hbm [shape: f32[16,128], index: 1, kind: input, shape index: {}]
  %s2 = inlined_call_operand.hbm [shape: f32[16,128], index: 2, kind: input, shape index: {}]
  %s3 = inlined_call_operand.hbm [shape: f32[8,128], index: 3, kind: output, shape index: {}]
  %s4 = sld [smem:[#allocation0]]
  $region38: #{tpu_custom_call.1} parent=0
    _
  %s6 = ssub.s32 1, %s4
  %s7 = scalar_select 0, %s6, %s4
  $region1: #{tpu_custom_call.1} parent=0
    #allocation2 [shape = 'u8[8192]{0}', space=vmem, size = 0x2000, scoped, tag = 'input window, operand 0, single buffered']
    #allocation3 [shape = 's32[1]{0}', space=sflag, size = 0x4, scoped, tag = 'scoped memory for tpu_custom_call.1']
    #allocation4 [shape = 's32[1]{0}', space=sflag, size = 0x4, scoped, tag = 'scoped memory for tpu_custom_call.1']
    #allocation5 [shape = 'u8[8192]{0}', space=vmem, size = 0x2000, scoped, tag = 'input window, operand 1, single buffered']
    #allocation6 [shape = 's32[1]{0}', space=sflag, size = 0x4, scoped, tag = 'scoped memory for tpu_custom_call.1']
    #allocation7 [shape = 'u8[8192]{0}', space=vmem, size = 0x2000, scoped, tag = 'input window, operand 2, single buffered']
    #allocation8 [shape = 'u8[4096]{0}', space=vmem, size = 0x1000, scoped, tag = 'output window, operand 0, single buffered']
    %8 = vsyncpa [#allocation3], 0
    %9 = vsyncpa [#allocation6], 0
    %10 = vsyncpa [#allocation4], 0
    // Predicated region
    $region2: #{tpu_custom_call.1} parent=1 // pred_check
      _
    $region3: #{tpu_custom_call.1} parent=1 // pred_check_branch
      %12 = sbr.rel (0) target = $region5
    $region4: #{tpu_custom_call.1} parent=1 // pred_region
      %s13 = sadd.s32 0, 0
      %s14 = smul.u32 2, %s13
      %s16 = ssub.s32 256, 256
      %17 = vsyncadd [#allocation3], %s16
      %s18 = smul.addr %s14, 128
      %s19 = scalar_lea.hbm %s0, %s18
      %s20 = sshll.u32 [#allocation2], 4
      %s21 = int_to_ptr.vmem [resolvable:$true] %s20
      %26 = dma.hbm_to_vmem [thread:$0]  %s19, 256, %s21, [#allocation3], 128, 128, 8
    $region5: #{tpu_custom_call.1} parent=1 // pred_fallthru
      _
    // Predicated region
    $region6: #{tpu_custom_call.1} parent=1 // pred_check
      _
    $region7: #{tpu_custom_call.1} parent=1 // pred_check_branch
      %28 = sbr.rel (0) target = $region9
    $region8: #{tpu_custom_call.1} parent=1 // pred_region
      %s29 = sadd.s32 0, 0
      %s30 = smul.u32 2, %s29
      %s32 = ssub.s32 256, 256
      %33 = vsyncadd [#allocation6], %s32
      %s34 = smul.addr %s30, 128
      %s35 = scalar_lea.hbm %s1, %s34
      %s36 = sshll.u32 [#allocation5], 4
      %s37 = int_to_ptr.vmem [resolvable:$true] %s36
      %42 = dma.hbm_to_vmem [thread:$0]  %s35, 256, %s37, [#allocation6], 128, 128, 8
    $region9: #{tpu_custom_call.1} parent=1 // pred_fallthru
      _
    // Predicated region
    $region10: #{tpu_custom_call.1} parent=1 // pred_check
      _
    $region11: #{tpu_custom_call.1} parent=1 // pred_check_branch
      %44 = sbr.rel (0) target = $region13
    $region12: #{tpu_custom_call.1} parent=1 // pred_region
      %s45 = sadd.s32 0, 0
      %s46 = smul.u32 2, %s45
      %s48 = ssub.s32 256, 256
      %49 = vsyncadd [#allocation6], %s48
      %s50 = smul.addr %s46, 128
      %s51 = scalar_lea.hbm %s2, %s50
      %s52 = sshll.u32 [#allocation7], 4
      %s53 = int_to_ptr.vmem [resolvable:$true] %s52
      %58 = dma.hbm_to_vmem [thread:$0]  %s51, 256, %s53, [#allocation6], 128, 128, 8
    $region13: #{tpu_custom_call.1} parent=1 // pred_fallthru
      _
    // Predicated region
    $region14: #{tpu_custom_call.1} parent=1 // pred_check
      _
    $region15: #{tpu_custom_call.1} parent=1 // pred_check_branch
      %60 = sbr.rel (0) target = $region17
    $region16: #{tpu_custom_call.1} parent=1 // pred_region
      %61 = dma.done [#allocation3], 256
    $region17: #{tpu_custom_call.1} parent=1 // pred_fallthru
      _
    // Predicated region
    $region18: #{tpu_custom_call.1} parent=1 // pred_check
      _
    $region19: #{tpu_custom_call.1} parent=1 // pred_check_branch
      %63 = sbr.rel (0) target = $region21
    $region20: #{tpu_custom_call.1} parent=1 // pred_region
      %64 = dma.done [#allocation6], 256
    $region21: #{tpu_custom_call.1} parent=1 // pred_fallthru
      _
    // Predicated region
    $region22: #{tpu_custom_call.1} parent=1 // pred_check
      _
    $region23: #{tpu_custom_call.1} parent=1 // pred_check_branch
      %66 = sbr.rel (0) target = $region25
    $region24: #{tpu_custom_call.1} parent=1 // pred_region
      %67 = dma.done [#allocation6], 256
    $region25: #{tpu_custom_call.1} parent=1 // pred_fallthru
      _
    %s68 = sadd.s32 0, 0
    %s69 = smul.u32 2, %s68
    %s70 = sadd.s32 0, 0
    %s71 = smul.u32 2, %s70
    %s72 = sadd.s32 0, 0
    %s73 = smul.u32 2, %s72
    %p74 = scmp.eq.s32.totalorder 0, 0
    // Predicated region
    $region26: #{tpu_custom_call.1} parent=1 // pred_check
      %p75 = pneg %p74
    $region27: #{tpu_custom_call.1} parent=1 // pred_check_branch
      %77 = sbr.rel (%p75) target = $region29
    $region28: #{tpu_custom_call.1} parent=1 // pred_region
      %78 = vst [vmem:[#allocation8] sm:$0xff] 0.0
    $region29: #{tpu_custom_call.1} parent=1 // pred_fallthru
      _
    %v79 = vld [vmem:[#allocation2] sm:$0xff]
    %v80 = vld [vmem:[#allocation2 + $0x8] sm:$0xff]
    %v81 = vld [vmem:[#allocation5] sm:$0xff]
    %v82 = vld [vmem:[#allocation5 + $0x8] sm:$0xff]
    %v83 = vsub.f32 %v79, %v81
    %v84 = vsub.f32 %v80, %v82
    %v85 = vld [vmem:[#allocation7] sm:$0xff]
    %v86 = vld [vmem:[#allocation7 + $0x8] sm:$0xff]
    %v87 = vsub.f32 %v79, %v85
    %v88 = vsub.f32 %v80, %v86
    %v89 = vmul.f32 %v83, %v83
    %v90 = vmul.f32 %v84, %v84
    %v91 = vmul.f32 %v87, %v87
    %v92 = vmul.f32 %v88, %v88
    %v93 = vsub.f32 %v89, %v91
    %v94 = vsub.f32 %v90, %v92
    %v95 = vld [vmem:[#allocation8] sm:$0xff]
    %v96 = vadd.f32 %v93, %v94
    %v97 = vadd.f32 %v95, %v96
    %98 = vst [vmem:[#allocation8] sm:$0xff] %v97
    // Predicated region
    $region30: #{tpu_custom_call.1} parent=1 // pred_check
      _
    $region31: #{tpu_custom_call.1} parent=1 // pred_check_branch
      %100 = sbr.rel (0) target = $region33
    $region32: #{tpu_custom_call.1} parent=1 // pred_region
      %s102 = ssub.s32 128, 128
      %103 = vsyncadd [#allocation4], %s102
      %s105 = sshll.u32 [#allocation8], 4
      %s106 = int_to_ptr.vmem [resolvable:$true] %s105
      %108 = dma.vmem_to_hbm [thread:$0]  %s106, 128, %s3, [#allocation4]
    $region33: #{tpu_custom_call.1} parent=1 // pred_fallthru
      _
    // Predicated region
    $region34: #{tpu_custom_call.1} parent=1 // pred_check
      _
    $region35: #{tpu_custom_call.1} parent=1 // pred_check_branch
      %110 = sbr.rel (0) target = $region37
    $region36: #{tpu_custom_call.1} parent=1 // pred_region
      %111 = dma.done [#allocation4], 128
    $region37: #{tpu_custom_call.1} parent=1 // pred_fallthru
      _
    %112 = vsyncpa [#allocation3], 1
    %113 = vsyncpa [#allocation6], 1
    %114 = vsyncpa [#allocation4], 1

</llo_original>
